<compile_context>
chip_gen: v7x
topology: tpu7x:2x2x1
jax: 0.10.0
libtpu: 0.0.40
codegen_flags: <defaults>
</compile_context>

<pallas_src>
import jax
import jax.numpy as jnp
from jax.experimental import pallas as pl
from jax.experimental.pallas import tpu as pltpu

_INV_SQRT2 = 0.7071067811865476


def _gelu_exact(v):
    # nn.GELU() default = exact erf formulation (matches PyTorch).
    return 0.5 * v * (1.0 + jax.lax.erf(v * jnp.float32(_INV_SQRT2)))


# ---------------------------------------------------------------------------
# Kernel: one batch sample per grid step; x block is (1, C, HW).
# ---------------------------------------------------------------------------
def net_kernel(x_ref, a1_ref, b1_ref, a2_ref, b2_ref,
               p1_ref, p2_ref, p34_ref, bo_ref, o_ref):
    x = x_ref[0]  # (C, HW)  channels on sublanes, pixels on lanes

    # block1 first conv+bn (+gelu) : (C, HW)
    g1 = _gelu_exact(jnp.dot(a1_ref[...], x,
                             preferred_element_type=jnp.float32) + b1_ref[...])
    # block2 first conv+bn (+gelu) : (2C, HW)
    g2 = _gelu_exact(jnp.dot(a2_ref[...], x,
                             preferred_element_type=jnp.float32) + b2_ref[...])

    # folded linear tail: second convs of blocks 1/2, blocks 3/4, concat,
    # and the output 1x1 conv collapse into three (10, .) matrices + bias.
    out = (jnp.dot(p1_ref[...], g1, preferred_element_type=jnp.float32)
           + jnp.dot(p2_ref[...], g2, preferred_element_type=jnp.float32)
           + jnp.dot(p34_ref[...], x, preferred_element_type=jnp.float32)
           + bo_ref[...])
    o_ref[0] = out.astype(o_ref.dtype)


# ---------------------------------------------------------------------------
# Host-side parameter preparation.
# ---------------------------------------------------------------------------
def fold_bn(w, bias, gamma, beta, mean, var, eps=1e-5):
    """Fold conv (W:(Cin,Cout), b) + eval-mode BN into (W', t): y = x@W' + t."""
    s = gamma / jnp.sqrt(var + eps)
    return w * s, (bias - mean) * s + beta


def prepare_kernel_params(params, C):
    """Fold the linear tail + transpose everything for the (C, HW) layout."""
    (w1a, t1a, w1b, t1b, w2a, t2a, w2b, t2b,
     w3, t3, w4, t4, wo, bo) = params

    # Linear-tail folding (exact algebra, computed once in f32 on host).
    W1p = w1b @ wo[0:C]                                # (C, 10)
    W2p = w2b @ wo[C:3 * C]                            # (2C, 10)
    W34p = w3 @ wo[3 * C:6 * C] + w4 @ wo[6 * C:12 * C]  # (C, 10)
    bop = (bo + t1b @ wo[0:C] + t2b @ wo[C:3 * C]
           + t3 @ wo[3 * C:6 * C] + t4 @ wo[6 * C:12 * C])  # (10,)

    # Transpose for left-multiplication against (C, HW) pixel blocks.
    return (w1a.T, t1a.reshape(C, 1),
            w2a.T, t2a.reshape(2 * C, 1),
            W1p.T, W2p.T, W34p.T, bop.reshape(10, 1))


@jax.jit
def net_forward(x_nchw, params):
    N, C, H, W = x_nchw.shape
    HW = H * W
    assert HW % 128 == 0, "H*W must be a multiple of 128 for lane-dense tiles"

    a1, b1, a2, b2, p1, p2, p34, bO = prepare_kernel_params(params, C)
    kps = (a1, b1, a2, b2, p1, p2, p34, bO)

    x3d = x_nchw.reshape(N, C, HW)          # native NCHW view, no transpose

    full = lambda arr: pl.BlockSpec(arr.shape, lambda n: (0, 0))
    in_specs = [pl.BlockSpec((1, C, HW), lambda n: (n, 0, 0))] + [
        full(a) for a in kps
    ]

    out3d = pl.pallas_call(
        net_kernel,
        out_shape=jax.ShapeDtypeStruct((N, 10, HW), jnp.float32),
        grid=(N,),
        in_specs=in_specs,
        out_specs=pl.BlockSpec((1, 10, HW), lambda n: (n, 0, 0)),
        compiler_params=pltpu.CompilerParams(
            dimension_semantics=("parallel",)),
    )(x3d, *kps)

    return out3d.reshape(N, 10, H, W)


# ---------------------------------------------------------------------------
# Deterministic parameters (eval-mode BN already folded into each conv).
# ---------------------------------------------------------------------------
def make_params(key, C):
    ks = iter(jax.random.split(key, 64))
    nrm = lambda shape, scale=0.1: scale * jax.random.normal(
        next(ks), shape, jnp.float32)

    def conv_bn(cin, cout):
        w = nrm((cin, cout))
        b = nrm((cout,))
        gamma = 1.0 + nrm((cout,), 0.05)
        beta = nrm((cout,), 0.05)
        mean = nrm((cout,), 0.05)
        var = 1.0 + jnp.abs(nrm((cout,), 0.05))
        return fold_bn(w, b, gamma, beta, mean, var)

    w1a, t1a = conv_bn(C, C)
    w1b, t1b = conv_bn(C, C)
    w2a, t2a = conv_bn(C, 2 * C)
    w2b, t2b = conv_bn(2 * C, 2 * C)
    w3, t3 = conv_bn(C, 3 * C)
    w4, t4 = conv_bn(C, 6 * C)
    wo = nrm((12 * C, 10))
    bo = nrm((10,))
    return (w1a, t1a, w1b, t1b, w2a, t2a, w2b, t2b,
            w3, t3, w4, t4, wo, bo)


def net_forward_ref(x_nchw, params):
    """Pure-JAX reference following the original module structure."""
    N, C, H, W = x_nchw.shape
    xp = jnp.transpose(x_nchw, (0, 2, 3, 1)).reshape(-1, C)
    (w1a, t1a, w1b, t1b, w2a, t2a, w2b, t2b,
     w3, t3, w4, t4, wo, bo) = params
    cb = lambda v, w, t: v @ w + t
    g = lambda v: 0.5 * v * (1.0 + jax.lax.erf(v * _INV_SQRT2))
    o1 = cb(g(cb(xp, w1a, t1a)), w1b, t1b)
    o2 = cb(g(cb(xp, w2a, t2a)), w2b, t2b)
    o3 = cb(xp, w3, t3)
    o4 = cb(xp, w4, t4)
    cat = jnp.concatenate([o1, o2, o3, o4], axis=-1)
    out = cat @ wo + bo
    return jnp.transpose(out.reshape(N, H, W, 10), (0, 3, 1, 2))


if __name__ == "__main__":
    key = jax.random.PRNGKey(0)
    k_x, k_p = jax.random.split(key)

    N, C, H, W = 2, 8, 16, 16          # in_dim = 8
    x = jax.random.normal(k_x, (N, C, H, W), jnp.float32)
    params = make_params(k_p, C)

    out = net_forward(x, params)
    jax.block_until_ready(out)

    ref = net_forward_ref(x, params)
    assert out.shape == (N, 10, H, W), out.shape
    assert jnp.allclose(out, ref, atol=1e-4, rtol=1e-4), \
        float(jnp.max(jnp.abs(out - ref)))

    print("KERNEL_OK")
</pallas_src>

<mosaic_0001>
module attributes {stable_mosaic.version = 11 : i64} {
  func.func @net_kernel(%arg0: i32, %arg1: memref<1x8x256xf32, #tpu.memory_space<vmem>>, %arg2: memref<8x8xf32, #tpu.memory_space<vmem>>, %arg3: memref<8x1xf32, #tpu.memory_space<vmem>>, %arg4: memref<16x8xf32, #tpu.memory_space<vmem>>, %arg5: memref<16x1xf32, #tpu.memory_space<vmem>>, %arg6: memref<10x8xf32, #tpu.memory_space<vmem>>, %arg7: memref<10x16xf32, #tpu.memory_space<vmem>>, %arg8: memref<10x8xf32, #tpu.memory_space<vmem>>, %arg9: memref<10x1xf32, #tpu.memory_space<vmem>>, %arg10: memref<1x10x256xf32, #tpu.memory_space<vmem>>) attributes {dimension_semantics = [#tpu.dimension_semantics<parallel>], iteration_bounds = array<i64: 2>, scalar_prefetch = 0 : i64, scratch_operands = 0 : i64, tpu.core_type = #tpu.core_type<tc>, window_params = [{transform_indices = @transform_0, window_bounds = array<i64: 1, 8, 256>}, {pipeline_mode = #tpu.pipeline_mode<synchronous>, transform_indices = @transform_1, window_bounds = array<i64: 8, 8>}, {pipeline_mode = #tpu.pipeline_mode<synchronous>, transform_indices = @transform_2, window_bounds = array<i64: 8, 1>}, {pipeline_mode = #tpu.pipeline_mode<synchronous>, transform_indices = @transform_3, window_bounds = array<i64: 16, 8>}, {pipeline_mode = #tpu.pipeline_mode<synchronous>, transform_indices = @transform_4, window_bounds = array<i64: 16, 1>}, {pipeline_mode = #tpu.pipeline_mode<synchronous>, transform_indices = @transform_5, window_bounds = array<i64: 10, 8>}, {pipeline_mode = #tpu.pipeline_mode<synchronous>, transform_indices = @transform_6, window_bounds = array<i64: 10, 16>}, {pipeline_mode = #tpu.pipeline_mode<synchronous>, transform_indices = @transform_7, window_bounds = array<i64: 10, 8>}, {pipeline_mode = #tpu.pipeline_mode<synchronous>, transform_indices = @transform_8, window_bounds = array<i64: 10, 1>}, {transform_indices = @transform_9, window_bounds = array<i64: 1, 10, 256>}]} {
    %c0 = arith.constant 0 : index
    %c0_0 = arith.constant 0 : index
    %c0_1 = arith.constant 0 : index
    %0 = vector.load %arg1[%c0, %c0_0, %c0_1] : memref<1x8x256xf32, #tpu.memory_space<vmem>>, vector<1x8x256xf32>
    %1 = vector.shape_cast %0 : vector<1x8x256xf32> to vector<8x256xf32>
    %c0_2 = arith.constant 0 : index
    %c0_3 = arith.constant 0 : index
    %2 = vector.load %arg2[%c0_2, %c0_3] : memref<8x8xf32, #tpu.memory_space<vmem>>, vector<8x8xf32>
    %cst = arith.constant dense<0.000000e+00> : vector<8x256xf32>
    %3 = tpu.matmul %2, %1, %cst {dimension_numbers = #tpu.dot_dimension_numbers<[1], [0], [0], [1], [0, 0, 1, 1], [], []>} : vector<8x8xf32>, vector<8x256xf32>, vector<8x256xf32> -> vector<8x256xf32>
    %c0_4 = arith.constant 0 : index
    %c0_5 = arith.constant 0 : index
    %4 = vector.load %arg3[%c0_4, %c0_5] : memref<8x1xf32, #tpu.memory_space<vmem>>, vector<8x1xf32>
    %5 = vector.broadcast %4 : vector<8x1xf32> to vector<8x256xf32>
    %6 = arith.addf %3, %5 : vector<8x256xf32>
    %cst_6 = arith.constant 5.000000e-01 : f32
    %7 = vector.broadcast %cst_6 : f32 to vector<8x256xf32>
    %8 = arith.mulf %7, %6 : vector<8x256xf32>
    %cst_7 = arith.constant 0.707106769 : f32
    %9 = vector.broadcast %cst_7 : f32 to vector<8x256xf32>
    %10 = arith.mulf %6, %9 : vector<8x256xf32>
    %11 = math.erf %10 : vector<8x256xf32>
    %cst_8 = arith.constant 1.000000e+00 : f32
    %12 = vector.broadcast %cst_8 : f32 to vector<8x256xf32>
    %13 = arith.addf %12, %11 : vector<8x256xf32>
    %14 = arith.mulf %8, %13 : vector<8x256xf32>
    %c0_9 = arith.constant 0 : index
    %c0_10 = arith.constant 0 : index
    %15 = vector.load %arg4[%c0_9, %c0_10] : memref<16x8xf32, #tpu.memory_space<vmem>>, vector<16x8xf32>
    %cst_11 = arith.constant dense<0.000000e+00> : vector<16x256xf32>
    %16 = tpu.matmul %15, %1, %cst_11 {dimension_numbers = #tpu.dot_dimension_numbers<[1], [0], [0], [1], [0, 0, 1, 1], [], []>} : vector<16x8xf32>, vector<8x256xf32>, vector<16x256xf32> -> vector<16x256xf32>
    %c0_12 = arith.constant 0 : index
    %c0_13 = arith.constant 0 : index
    %17 = vector.load %arg5[%c0_12, %c0_13] : memref<16x1xf32, #tpu.memory_space<vmem>>, vector<16x1xf32>
    %18 = vector.broadcast %17 : vector<16x1xf32> to vector<16x256xf32>
    %19 = arith.addf %16, %18 : vector<16x256xf32>
    %cst_14 = arith.constant 5.000000e-01 : f32
    %20 = vector.broadcast %cst_14 : f32 to vector<16x256xf32>
    %21 = arith.mulf %20, %19 : vector<16x256xf32>
    %cst_15 = arith.constant 0.707106769 : f32
    %22 = vector.broadcast %cst_15 : f32 to vector<16x256xf32>
    %23 = arith.mulf %19, %22 : vector<16x256xf32>
    %24 = math.erf %23 : vector<16x256xf32>
    %cst_16 = arith.constant 1.000000e+00 : f32
    %25 = vector.broadcast %cst_16 : f32 to vector<16x256xf32>
    %26 = arith.addf %25, %24 : vector<16x256xf32>
    %27 = arith.mulf %21, %26 : vector<16x256xf32>
    %c0_17 = arith.constant 0 : index
    %c0_18 = arith.constant 0 : index
    %28 = vector.load %arg6[%c0_17, %c0_18] : memref<10x8xf32, #tpu.memory_space<vmem>>, vector<10x8xf32>
    %cst_19 = arith.constant dense<0.000000e+00> : vector<10x256xf32>
    %29 = tpu.matmul %28, %14, %cst_19 {dimension_numbers = #tpu.dot_dimension_numbers<[1], [0], [0], [1], [0, 0, 1, 1], [], []>} : vector<10x8xf32>, vector<8x256xf32>, vector<10x256xf32> -> vector<10x256xf32>
    %c0_20 = arith.constant 0 : index
    %c0_21 = arith.constant 0 : index
    %30 = vector.load %arg7[%c0_20, %c0_21] : memref<10x16xf32, #tpu.memory_space<vmem>>, vector<10x16xf32>
    %cst_22 = arith.constant dense<0.000000e+00> : vector<10x256xf32>
    %31 = tpu.matmul %30, %27, %cst_22 {dimension_numbers = #tpu.dot_dimension_numbers<[1], [0], [0], [1], [0, 0, 1, 1], [], []>} : vector<10x16xf32>, vector<16x256xf32>, vector<10x256xf32> -> vector<10x256xf32>
    %32 = arith.addf %29, %31 : vector<10x256xf32>
    %c0_23 = arith.constant 0 : index
    %c0_24 = arith.constant 0 : index
    %33 = vector.load %arg8[%c0_23, %c0_24] : memref<10x8xf32, #tpu.memory_space<vmem>>, vector<10x8xf32>
    %cst_25 = arith.constant dense<0.000000e+00> : vector<10x256xf32>
    %34 = tpu.matmul %33, %1, %cst_25 {dimension_numbers = #tpu.dot_dimension_numbers<[1], [0], [0], [1], [0, 0, 1, 1], [], []>} : vector<10x8xf32>, vector<8x256xf32>, vector<10x256xf32> -> vector<10x256xf32>
    %35 = arith.addf %32, %34 : vector<10x256xf32>
    %c0_26 = arith.constant 0 : index
    %c0_27 = arith.constant 0 : index
    %36 = vector.load %arg9[%c0_26, %c0_27] : memref<10x1xf32, #tpu.memory_space<vmem>>, vector<10x1xf32>
    %37 = vector.broadcast %36 : vector<10x1xf32> to vector<10x256xf32>
    %38 = arith.addf %35, %37 : vector<10x256xf32>
    %c0_28 = arith.constant 0 : index
    %c0_29 = arith.constant 0 : index
    %c0_30 = arith.constant 0 : index
    %39 = vector.load %arg10[%c0_28, %c0_29, %c0_30] : memref<1x10x256xf32, #tpu.memory_space<vmem>>, vector<1x10x256xf32>
    %40 = vector.shape_cast %39 : vector<1x10x256xf32> to vector<10x256xf32>
    %41 = vector.shape_cast %38 : vector<10x256xf32> to vector<1x10x256xf32>
    tpu.vector_store %arg10[%c0_28, %c0_29, %c0_30], %41 {strides = array<i32>} : memref<1x10x256xf32, #tpu.memory_space<vmem>>, vector<1x10x256xf32>,
    return
  }
  func.func @transform_0(%arg0: i32) -> (i32, i32, i32) {
    %c0_i32 = arith.constant 0 : i32
    %c0_i32_0 = arith.constant 0 : i32
    %c0_i32_1 = arith.constant 0 : i32
    return %arg0, %c0_i32, %c0_i32_0 : i32, i32, i32
  }
  func.func @transform_1(%arg0: i32) -> (i32, i32) {
    %c0_i32 = arith.constant 0 : i32
    %c0_i32_0 = arith.constant 0 : i32
    %c0_i32_1 = arith.constant 0 : i32
    return %c0_i32, %c0_i32_0 : i32, i32
  }
  func.func @transform_2(%arg0: i32) -> (i32, i32) {
    %c0_i32 = arith.constant 0 : i32
    %c0_i32_0 = arith.constant 0 : i32
    %c0_i32_1 = arith.constant 0 : i32
    return %c0_i32, %c0_i32_0 : i32, i32
  }
  func.func @transform_3(%arg0: i32) -> (i32, i32) {
    %c0_i32 = arith.constant 0 : i32
    %c0_i32_0 = arith.constant 0 : i32
    %c0_i32_1 = arith.constant 0 : i32
    return %c0_i32, %c0_i32_0 : i32, i32
  }
  func.func @transform_4(%arg0: i32) -> (i32, i32) {
    %c0_i32 = arith.constant 0 : i32
    %c0_i32_0 = arith.constant 0 : i32
    %c0_i32_1 = arith.constant 0 : i32
    return %c0_i32, %c0_i32_0 : i32, i32
  }
  func.func @transform_5(%arg0: i32) -> (i32, i32) {
    %c0_i32 = arith.constant 0 : i32
    %c0_i32_0 = arith.constant 0 : i32
    %c0_i32_1 = arith.constant 0 : i32
    return %c0_i32, %c0_i32_0 : i32, i32
  }
  func.func @transform_6(%arg0: i32) -> (i32, i32) {
    %c0_i32 = arith.constant 0 : i32
    %c0_i32_0 = arith.constant 0 : i32
    %c0_i32_1 = arith.constant 0 : i32
    return %c0_i32, %c0_i32_0 : i32, i32
  }
  func.func @transform_7(%arg0: i32) -> (i32, i32) {
    %c0_i32 = arith.constant 0 : i32
    %c0_i32_0 = arith.constant 0 : i32
    %c0_i32_1 = arith.constant 0 : i32
    return %c0_i32, %c0_i32_0 : i32, i32
  }
  func.func @transform_8(%arg0: i32) -> (i32, i32) {
    %c0_i32 = arith.constant 0 : i32
    %c0_i32_0 = arith.constant 0 : i32
    %c0_i32_1 = arith.constant 0 : i32
    return %c0_i32, %c0_i32_0 : i32, i32
  }
  func.func @transform_9(%arg0: i32) -> (i32, i32, i32) {
    %c0_i32 = arith.constant 0 : i32
    %c0_i32_0 = arith.constant 0 : i32
    %c0_i32_1 = arith.constant 0 : i32
    return %arg0, %c0_i32, %c0_i32_0 : i32, i32, i32
  }
}

</mosaic_0001>

<llo_original>
// kernel: net_forward.1
$region0: #{net_forward.1}
  #allocation0 [shape = 'u32[]', space=smem, size = 0x4, offset = 0x4, fixed_abs, tag = 'smem constant byte address 0x4 - core index']
  #allocation1 [shape = 'u32[144,128]{1,0:T(1,128)}', space=vmem, size = 0x12000, scoped, tag = 'internal scratch']
  %s0 = inlined_call_operand.vmem [shape: f32[2,8,256], index: 0, kind: input, shape index: {}]
  %s1 = inlined_call_operand.vmem [shape: f32[8,8], index: 1, kind: input, shape index: {}]
  %s2 = inlined_call_operand.vmem [shape: f32[8,1], index: 2, kind: input, shape index: {}]
  %s3 = inlined_call_operand.vmem [shape: f32[16,8], index: 3, kind: input, shape index: {}]
  %s4 = inlined_call_operand.vmem [shape: f32[16,1], index: 4, kind: input, shape index: {}]
  %s5 = inlined_call_operand.vmem [shape: f32[10,8], index: 5, kind: input, shape index: {}]
  %s6 = inlined_call_operand.vmem [shape: f32[10,16], index: 6, kind: input, shape index: {}]
  %s7 = inlined_call_operand.vmem [shape: f32[10,8], index: 7, kind: input, shape index: {}]
  %s8 = inlined_call_operand.vmem [shape: f32[10,1], index: 8, kind: input, shape index: {}]
  %s9 = inlined_call_operand.vmem [shape: f32[2,10,256], index: 9, kind: output, shape index: {}]
  %s10 = sld [smem:[#allocation0]]
  $region69: #{net_forward.1} parent=0
    _
  %s12 = ssub.s32 1, %s10
  %s13 = scalar_select 0, %s12, %s10
  loop: start=0, step=1, limit=4
  $region2: #{net_forward.1} parent=0 // loop_pre_header
    _
  $region3: #{net_forward.1} parent=0 // loop_header
    %s15 = sphi 0, %s19
    %p16 = scmp.ge.s32.totalorder %s15, 4
    %s25 = sphi 0, %s27
    %s28 = sphi 0, %s25
    %s29 = sphi 0, %s28
    %s45 = sphi 0, %s29
    %s49 = sphi 0, %s49
    %s51 = sphi 0, %s49
    %s52 = sphi 0, %s51
    %s66 = sphi 0, %s52
    %s70 = sphi 0, %s70
    %s72 = sphi 0, %s70
    %s73 = sphi 0, %s72
    %s87 = sphi 0, %s73
    %s91 = sphi 0, %s91
    %s93 = sphi 0, %s91
    %s94 = sphi 0, %s93
    %s108 = sphi 0, %s94
    %s112 = sphi 0, %s112
    %s114 = sphi 0, %s112
    %s115 = sphi 0, %s114
    %s129 = sphi 0, %s115
    %s133 = sphi 0, %s133
    %s135 = sphi 0, %s133
    %s136 = sphi 0, %s135
    %s150 = sphi 0, %s136
    %s154 = sphi 0, %s154
    %s156 = sphi 0, %s154
    %s157 = sphi 0, %s156
    %s171 = sphi 0, %s157
    %s175 = sphi 0, %s175
    %s177 = sphi 0, %s175
    %s178 = sphi 0, %s177
    %s192 = sphi 0, %s178
    %s196 = sphi 0, %s196
    %s198 = sphi 0, %s196
    %s199 = sphi 0, %s198
    %s213 = sphi 0, %s199
    %s219 = sphi 0, %s221
    %s222 = sphi 0, %s219
    %s223 = sphi 0, %s222
    %s239 = sphi 0, %s223
  $region4: #{net_forward.1} parent=0 // loop_header_branch
    %18 = sbr.rel (%p16) target = $region8
  $region5: #{net_forward.1} parent=0 // loop_body
    %s20 = ssub.s32 %s15, 1
    %s21 = ssub.s32 %s15, 2
    %s22 = sadd.s32 %s15, 1
    %s23 = ssub.s32 %s15, %s22
    %p24 = scmp.eq.s32.totalorder %s23, 0
    %s26 = sadd.s32 %s25, 1
    %s27 = scalar_select %p24, %s25, %s26
    %p30 = pneg %p24
    %p31 = scmp.eq.s32.totalorder %s15, 1
    %p32 = por %p30, %p31
    %p33 = scmp.ne.s32.totalorder %s25, %s28
    %p34 = scmp.eq.s32.totalorder %s15, 0
    %p35 = por %p33, %p34
    %p36 = scmp.ne.s32.totalorder %s25, %s28
    %p37 = scmp.eq.s32.totalorder %s20, 1
    %p38 = por %p36, %p37
    %p39 = scmp.ne.s32.totalorder %s28, %s29
    %p40 = scmp.eq.s32.totalorder %s20, 0
    %p41 = por %p39, %p40
    %p42 = scmp.ne.s32.totalorder %s28, %s29
    %p43 = scmp.eq.s32.totalorder %s21, 1
    %p44 = por %p42, %p43
    %p46 = scmp.ne.s32.totalorder %s29, %s45
    %p47 = scmp.eq.s32.totalorder %s21, 0
    %p48 = por %p46, %p47
    %s50 = sadd.s32 %s49, 1
    %p53 = scmp.eq.s32.totalorder %s15, 1
    %p54 = scmp.ne.s32.totalorder %s49, %s51
    %p55 = scmp.eq.s32.totalorder %s15, 0
    %p56 = por %p54, %p55
    %p57 = scmp.ne.s32.totalorder %s49, %s51
    %p58 = scmp.eq.s32.totalorder %s20, 1
    %p59 = por %p57, %p58
    %p60 = scmp.ne.s32.totalorder %s51, %s52
    %p61 = scmp.eq.s32.totalorder %s20, 0
    %p62 = por %p60, %p61
    %p63 = scmp.ne.s32.totalorder %s51, %s52
    %p64 = scmp.eq.s32.totalorder %s21, 1
    %p65 = por %p63, %p64
    %p67 = scmp.ne.s32.totalorder %s52, %s66
    %p68 = scmp.eq.s32.totalorder %s21, 0
    %p69 = por %p67, %p68
    %s71 = sadd.s32 %s70, 1
    %p74 = scmp.eq.s32.totalorder %s15, 1
    %p75 = scmp.ne.s32.totalorder %s70, %s72
    %p76 = scmp.eq.s32.totalorder %s15, 0
    %p77 = por %p75, %p76
    %p78 = scmp.ne.s32.totalorder %s70, %s72
    %p79 = scmp.eq.s32.totalorder %s20, 1
    %p80 = por %p78, %p79
    %p81 = scmp.ne.s32.totalorder %s72, %s73
    %p82 = scmp.eq.s32.totalorder %s20, 0
    %p83 = por %p81, %p82
    %p84 = scmp.ne.s32.totalorder %s72, %s73
    %p85 = scmp.eq.s32.totalorder %s21, 1
    %p86 = por %p84, %p85
    %p88 = scmp.ne.s32.totalorder %s73, %s87
    %p89 = scmp.eq.s32.totalorder %s21, 0
    %p90 = por %p88, %p89
    %s92 = sadd.s32 %s91, 1
    %p95 = scmp.eq.s32.totalorder %s15, 1
    %p96 = scmp.ne.s32.totalorder %s91, %s93
    %p97 = scmp.eq.s32.totalorder %s15, 0
    %p98 = por %p96, %p97
    %p99 = scmp.ne.s32.totalorder %s91, %s93
    %p100 = scmp.eq.s32.totalorder %s20, 1
    %p101 = por %p99, %p100
    %p102 = scmp.ne.s32.totalorder %s93, %s94
    %p103 = scmp.eq.s32.totalorder %s20, 0
    %p104 = por %p102, %p103
    %p105 = scmp.ne.s32.totalorder %s93, %s94
    %p106 = scmp.eq.s32.totalorder %s21, 1
    %p107 = por %p105, %p106
    %p109 = scmp.ne.s32.totalorder %s94, %s108
    %p110 = scmp.eq.s32.totalorder %s21, 0
    %p111 = por %p109, %p110
    %s113 = sadd.s32 %s112, 1
    %p116 = scmp.eq.s32.totalorder %s15, 1
    %p117 = scmp.ne.s32.totalorder %s112, %s114
    %p118 = scmp.eq.s32.totalorder %s15, 0
    %p119 = por %p117, %p118
    %p120 = scmp.ne.s32.totalorder %s112, %s114
    %p121 = scmp.eq.s32.totalorder %s20, 1
    %p122 = por %p120, %p121
    %p123 = scmp.ne.s32.totalorder %s114, %s115
    %p124 = scmp.eq.s32.totalorder %s20, 0
    %p125 = por %p123, %p124
    %p126 = scmp.ne.s32.totalorder %s114, %s115
    %p127 = scmp.eq.s32.totalorder %s21, 1
    %p128 = por %p126, %p127
    %p130 = scmp.ne.s32.totalorder %s115, %s129
    %p131 = scmp.eq.s32.totalorder %s21, 0
    %p132 = por %p130, %p131
    %s134 = sadd.s32 %s133, 1
    %p137 = scmp.eq.s32.totalorder %s15, 1
    %p138 = scmp.ne.s32.totalorder %s133, %s135
    %p139 = scmp.eq.s32.totalorder %s15, 0
    %p140 = por %p138, %p139
    %p141 = scmp.ne.s32.totalorder %s133, %s135
    %p142 = scmp.eq.s32.totalorder %s20, 1
    %p143 = por %p141, %p142
    %p144 = scmp.ne.s32.totalorder %s135, %s136
    %p145 = scmp.eq.s32.totalorder %s20, 0
    %p146 = por %p144, %p145
    %p147 = scmp.ne.s32.totalorder %s135, %s136
    %p148 = scmp.eq.s32.totalorder %s21, 1
    %p149 = por %p147, %p148
    %p151 = scmp.ne.s32.totalorder %s136, %s150
    %p152 = scmp.eq.s32.totalorder %s21, 0
    %p153 = por %p151, %p152
    %s155 = sadd.s32 %s154, 1
    %p158 = scmp.eq.s32.totalorder %s15, 1
    %p159 = scmp.ne.s32.totalorder %s154, %s156
    %p160 = scmp.eq.s32.totalorder %s15, 0
    %p161 = por %p159, %p160
    %p162 = scmp.ne.s32.totalorder %s154, %s156
    %p163 = scmp.eq.s32.totalorder %s20, 1
    %p164 = por %p162, %p163
    %p165 = scmp.ne.s32.totalorder %s156, %s157
    %p166 = scmp.eq.s32.totalorder %s20, 0
    %p167 = por %p165, %p166
    %p168 = scmp.ne.s32.totalorder %s156, %s157
    %p169 = scmp.eq.s32.totalorder %s21, 1
    %p170 = por %p168, %p169
    %p172 = scmp.ne.s32.totalorder %s157, %s171
    %p173 = scmp.eq.s32.totalorder %s21, 0
    %p174 = por %p172, %p173
    %s176 = sadd.s32 %s175, 1
    %p179 = scmp.eq.s32.totalorder %s15, 1
    %p180 = scmp.ne.s32.totalorder %s175, %s177
    %p181 = scmp.eq.s32.totalorder %s15, 0
    %p182 = por %p180, %p181
    %p183 = scmp.ne.s32.totalorder %s175, %s177
    %p184 = scmp.eq.s32.totalorder %s20, 1
    %p185 = por %p183, %p184
    %p186 = scmp.ne.s32.totalorder %s177, %s178
    %p187 = scmp.eq.s32.totalorder %s20, 0
    %p188 = por %p186, %p187
    %p189 = scmp.ne.s32.totalorder %s177, %s178
    %p190 = scmp.eq.s32.totalorder %s21, 1
    %p191 = por %p189, %p190
    %p193 = scmp.ne.s32.totalorder %s178, %s192
    %p194 = scmp.eq.s32.totalorder %s21, 0
    %p195 = por %p193, %p194
    %s197 = sadd.s32 %s196, 1
    %p200 = scmp.eq.s32.totalorder %s15, 1
    %p201 = scmp.ne.s32.totalorder %s196, %s198
    %p202 = scmp.eq.s32.totalorder %s15, 0
    %p203 = por %p201, %p202
    %p204 = scmp.ne.s32.totalorder %s196, %s198
    %p205 = scmp.eq.s32.totalorder %s20, 1
    %p206 = por %p204, %p205
    %p207 = scmp.ne.s32.totalorder %s198, %s199
    %p208 = scmp.eq.s32.totalorder %s20, 0
    %p209 = por %p207, %p208
    %p210 = scmp.ne.s32.totalorder %s198, %s199
    %p211 = scmp.eq.s32.totalorder %s21, 1
    %p212 = por %p210, %p211
    %p214 = scmp.ne.s32.totalorder %s199, %s213
    %p215 = scmp.eq.s32.totalorder %s21, 0
    %p216 = por %p214, %p215
    %s217 = ssub.s32 %s15, %s22
    %p218 = scmp.eq.s32.totalorder %s217, 0
    %s220 = sadd.s32 %s219, 1
    %s221 = scalar_select %p218, %s219, %s220
    %p224 = pneg %p218
    %p225 = scmp.eq.s32.totalorder %s15, 1
    %p226 = por %p224, %p225
    %p227 = scmp.ne.s32.totalorder %s219, %s222
    %p228 = scmp.eq.s32.totalorder %s15, 0
    %p229 = por %p227, %p228
    %p230 = scmp.ne.s32.totalorder %s219, %s222
    %p231 = scmp.eq.s32.totalorder %s20, 1
    %p232 = por %p230, %p231
    %p233 = scmp.ne.s32.totalorder %s222, %s223
    %p234 = scmp.eq.s32.totalorder %s20, 0
    %p235 = por %p233, %p234
    %p236 = scmp.ne.s32.totalorder %s222, %s223
    %p237 = scmp.eq.s32.totalorder %s21, 1
    %p238 = por %p236, %p237
    %p240 = scmp.ne.s32.totalorder %s223, %s239
    %p241 = scmp.eq.s32.totalorder %s21, 0
    %p242 = por %p240, %p241
    %p243 = scmp.le.s32.totalorder 1, %s15
    %p244 = scmp.lt.s32.totalorder %s15, 3
    %p245 = pnand %p243, %p244
    %p246 = pneg %p245
    // Predicated region
    $region9: #{net_forward.1} parent=5 // pred_check
      _
    $region10: #{net_forward.1} parent=5 // pred_check_branch
      %248 = sbr.rel (%p245) target = $region12
    $region11: #{net_forward.1} parent=5 // pred_region
      %s249 = ssub.s32 %s15, 1
      // Predicated region
      $region13: #{net_forward.1} parent=11 // pred_check
        %p250 = pneg %p62
      $region14: #{net_forward.1} parent=11 // pred_check_branch
        %252 = sbr.rel (%p250) target = $region16
      $region15: #{net_forward.1} parent=11 // pred_region
        _
      $region16: #{net_forward.1} parent=11 // pred_fallthru
        _
      // Predicated region
      $region17: #{net_forward.1} parent=11 // pred_check
        %p253 = pneg %p83
      $region18: #{net_forward.1} parent=11 // pred_check_branch
        %255 = sbr.rel (%p253) target = $region20
      $region19: #{net_forward.1} parent=11 // pred_region
        _
      $region20: #{net_forward.1} parent=11 // pred_fallthru
        _
      // Predicated region
      $region21: #{net_forward.1} parent=11 // pred_check
        %p256 = pneg %p104
      $region22: #{net_forward.1} parent=11 // pred_check_branch
        %258 = sbr.rel (%p256) target = $region24
      $region23: #{net_forward.1} parent=11 // pred_region
        _
      $region24: #{net_forward.1} parent=11 // pred_fallthru
        _
      // Predicated region
      $region25: #{net_forward.1} parent=11 // pred_check
        %p259 = pneg %p125
      $region26: #{net_forward.1} parent=11 // pred_check_branch
        %261 = sbr.rel (%p259) target = $region28
      $region27: #{net_forward.1} parent=11 // pred_region
        _
      $region28: #{net_forward.1} parent=11 // pred_fallthru
        _
      // Predicated region
      $region29: #{net_forward.1} parent=11 // pred_check
        %p262 = pneg %p146
      $region30: #{net_forward.1} parent=11 // pred_check_branch
        %264 = sbr.rel (%p262) target = $region32
      $region31: #{net_forward.1} parent=11 // pred_region
        _
      $region32: #{net_forward.1} parent=11 // pred_fallthru
        _
      // Predicated region
      $region33: #{net_forward.1} parent=11 // pred_check
        %p265 = pneg %p167
      $region34: #{net_forward.1} parent=11 // pred_check_branch
        %267 = sbr.rel (%p265) target = $region36
      $region35: #{net_forward.1} parent=11 // pred_region
        _
      $region36: #{net_forward.1} parent=11 // pred_fallthru
        _
      // Predicated region
      $region37: #{net_forward.1} parent=11 // pred_check
        %p268 = pneg %p188
      $region38: #{net_forward.1} parent=11 // pred_check_branch
        %270 = sbr.rel (%p268) target = $region40
      $region39: #{net_forward.1} parent=11 // pred_region
        _
      $region40: #{net_forward.1} parent=11 // pred_fallthru
        _
      // Predicated region
      $region41: #{net_forward.1} parent=11 // pred_check
        %p271 = pneg %p209
      $region42: #{net_forward.1} parent=11 // pred_check_branch
        %273 = sbr.rel (%p271) target = $region44
      $region43: #{net_forward.1} parent=11 // pred_region
        _
      $region44: #{net_forward.1} parent=11 // pred_fallthru
        _
    $region12: #{net_forward.1} parent=5 // pred_fallthru
      _
    %p274 = scmp.lt.s32.totalorder %s15, 2
    // Predicated region
    $region45: #{net_forward.1} parent=5 // pred_check
      %p275 = pneg %p274
    $region46: #{net_forward.1} parent=5 // pred_check_branch
      %277 = sbr.rel (%p275) target = $region48
    $region47: #{net_forward.1} parent=5 // pred_region
      // Predicated region
      $region49: #{net_forward.1} parent=47 // pred_check
        %p278 = pneg %p35
      $region50: #{net_forward.1} parent=47 // pred_check_branch
        %280 = sbr.rel (%p278) target = $region52
      $region51: #{net_forward.1} parent=47 // pred_region
        %p281 = scmp.lt.s32.totalorder %s15, 1
        %s282 = scalar_select %p281, %s15, 1
        %s283 = smul.addr %s282, 2
        %s284 = smul.addr %s283, 8
        %s285 = scalar_lea.vmem %s0, %s284
      $region52: #{net_forward.1} parent=47 // pred_fallthru
        _
    $region48: #{net_forward.1} parent=5 // pred_fallthru
      _
    %p286 = scmp.le.s32.totalorder 1, %s15
    %p287 = scmp.lt.s32.totalorder %s15, 3
    %p288 = pnand %p286, %p287
    %p289 = pneg %p288
    // Predicated region
    $region53: #{net_forward.1} parent=5 // pred_check
      _
    $region54: #{net_forward.1} parent=5 // pred_check_branch
      %291 = sbr.rel (%p288) target = $region56
    $region55: #{net_forward.1} parent=5 // pred_region
      %s292 = ssub.s32 %s15, 1
      %p293 = scmp.lt.s32.totalorder %s20, 1
      %s294 = scalar_select %p293, %s20, 1
      %s295 = smul.addr %s294, 2
      %s296 = smul.addr %s295, 8
      %s297 = scalar_lea.vmem %s0, %s296
      %p298 = pneg %p41
      %p299 = pneg %p38
      %p300 = pneg %p62
      %p301 = pneg %p59
      %p302 = pneg %p83
      %p303 = pneg %p80
      %p304 = pneg %p104
      %p305 = pneg %p101
      %p306 = pneg %p125
      %p307 = pneg %p122
      %p308 = pneg %p146
      %p309 = pneg %p143
      %p310 = pneg %p167
      %p311 = pneg %p164
      %p312 = pneg %p188
      %p313 = pneg %p185
      %p314 = pneg %p209
      %p315 = pneg %p206
      %p316 = pneg %p235
      %p317 = pneg %p232
      %p318 = scmp.lt.s32.totalorder %s20, 1
      %s319 = scalar_select %p318, %s20, 1
      %s320 = smul.addr %s319, 4
      %s321 = smul.addr %s320, 8
      %s322 = scalar_lea.vmem %s9, %s321
      %p323 = scmp.lt.s32.totalorder %s20, 1
      %s324 = scalar_select %p323, %s20, 1
      %s325 = smul.addr %s324, 2
      %s326 = smul.addr %s325, 8
      %s327 = scalar_lea.vmem %s0, %s326
      %p328 = scmp.lt.s32.totalorder %s20, 1
      %s329 = scalar_select %p328, %s20, 1
      %s330 = smul.addr %s329, 4
      %s331 = smul.addr %s330, 8
      %s332 = scalar_lea.vmem %s9, %s331
      %v333 = vld [vmem:[%s327] sm:$0xff]
      %v334 = vld [vmem:[%s327 + $0x8] sm:$0xff]
      %v335 = vld [vmem:[%s1] sm:$0xff]
      %v336 = vld [vmem:[%s2] sm:$0xff]
      %338 = vset.pattern.permute.xlu0 0
      %339 = vperm.xlu0 %338, %v336
      %v340 = vpop.permute.xlu0 %339
      %vm342 = vcmask 64512
      %v344 = vsel %vm342, %v335, 0
      %346 = vmatprep.subr.mxu0 %v334
      %347 = vmatpush1.msra.mxu0 %v333
      %348 = vmatprep.subr.mxu0 0.0
      %349 = vmatpush1.msra.mxu0 0.0
      %350 = vmatprep.subr.mxu0 0.0
      %351 = vmatpush1.msra.mxu0 0.0
      %352 = vmatprep.subr.mxu0 0.0
      %353 = vmatpush1.msra.mxu0 0.0
      %354 = vmatprep.subr.mxu0 0.0
      %355 = vmatpush1.msra.mxu0 0.0
      %356 = vmatprep.subr.mxu0 0.0
      %357 = vmatpush1.msra.mxu0 0.0
      %358 = vmatprep.subr.mxu0 0.0
      %359 = vmatpush1.msra.mxu0 0.0
      %360 = vmatprep.subr.mxu0 0.0
      %361 = vmatpush1.msra.mxu0 0.0
      %362 = vmatprep.subr.mxu0 0.0
      %363 = vmatpush1.msra.mxu0 0.0
      %364 = vmatprep.subr.mxu0 0.0
      %365 = vmatpush1.msra.mxu0 0.0
      %366 = vmatprep.subr.mxu0 0.0
      %367 = vmatpush1.msra.mxu0 0.0
      %368 = vmatprep.subr.mxu0 0.0
      %369 = vmatpush1.msra.mxu0 0.0
      %370 = vmatprep.subr.mxu0 0.0
      %371 = vmatpush1.msra.mxu0 0.0
      %372 = vmatprep.subr.mxu0 0.0
      %373 = vmatpush1.msra.mxu0 0.0
      %374 = vmatprep.subr.mxu0 0.0
      %375 = vmatpush1.msra.mxu0 0.0
      %376 = vmatprep.subr.mxu0 0.0
      %377 = vmatpush1.msra.mxu0 0.0
      %378 = vmatprep.subr.mxu0 0.0
      %379 = vmatpush1.msra.mxu0 0.0
      %380 = vmatprep.subr.mxu0 0.0
      %381 = vmatpush1.msra.mxu0 0.0
      %382 = vmatprep.subr.mxu0 0.0
      %383 = vmatpush1.msra.mxu0 0.0
      %384 = vmatprep.subr.mxu0 0.0
      %385 = vmatpush1.msra.mxu0 0.0
      %386 = vmatprep.subr.mxu0 0.0
      %387 = vmatpush1.msra.mxu0 0.0
      %388 = vmatprep.subr.mxu0 0.0
      %389 = vmatpush1.msra.mxu0 0.0
      %390 = vmatprep.subr.mxu0 0.0
      %391 = vmatpush1.msra.mxu0 0.0
      %392 = vmatprep.subr.mxu0 0.0
      %393 = vmatpush1.msra.mxu0 0.0
      %394 = vmatprep.subr.mxu0 0.0
      %395 = vmatpush1.msra.mxu0 0.0
      %396 = vmatprep.subr.mxu0 0.0
      %397 = vmatpush1.msra.mxu0 0.0
      %398 = vmatprep.subr.mxu0 0.0
      %399 = vmatpush1.msra.mxu0 0.0
      %400 = vmatprep.subr.mxu0 0.0
      %401 = vmatpush1.msra.mxu0 0.0
      %402 = vmatprep.subr.mxu0 0.0
      %403 = vmatpush1.msra.mxu0 0.0
      %404 = vmatprep.subr.mxu0 0.0
      %405 = vmatpush1.msra.mxu0 0.0
      %406 = vmatprep.subr.mxu0 0.0
      %407 = vmatpush1.msra.mxu0 0.0
      %408 = vmatprep.subr.mxu0 0.0
      %409 = vmatpush1.msra.mxu0 0.0
      %410 = vmatprep.mubr.f32.mxu0 0.0
      %411 = vmatmul.mubr.f32.gmra.mrb[0].mxu0 %v344
      %v412 = vpop.f32.mrb[0].mxu0
      %v413 = vadd.f32 %v340, %v412
      %v414 = vpop.f32.mrb[0].mxu0
      %v415 = vadd.f32 %v340, %v414
      %416 = vdwg.mxu0
      %v417 = vmul.f32 %v413, 0.5
      %v418 = vmul.f32 %v415, 0.5
      %v419 = vmul.f32 %v413, 0.70710677
      %v420 = vmul.f32 %v415, 0.70710677
      %v421 = verf.f32.pop %v419
      %v422 = verf.f32.pop %v420
      %v423 = vadd.f32 %v421, 1.0
      %v424 = vadd.f32 %v422, 1.0
      %v425 = vmul.f32 %v417, %v423
      %v426 = vmul.f32 %v418, %v424
      %v427 = vld [vmem:[%s3] sm:$0xff]
      %v428 = vld [vmem:[%s3 + $0x8] sm:$0xff]
      %v429 = vld [vmem:[%s4] sm:$0xff]
      %v430 = vld [vmem:[%s4 + $0x8] sm:$0xff]
      %432 = vset.pattern.permute.xlu0 0
      %433 = vperm.xlu0 %432, %v429
      %v434 = vpop.permute.xlu0 %433
      %437 = vset.pattern.permute.xlu0 0
      %438 = vperm.xlu0 %437, %v430
      %v439 = vpop.permute.xlu0 %438
      %v442 = vsel %vm342, %v427, 0
      %v445 = vsel %vm342, %v428, 0
      %447 = vmatprep.subr.mxu0 %v334
      %448 = vmatpush1.msra.mxu0 %v333
      %449 = vmatprep.subr.mxu0 0.0
      %450 = vmatpush1.msra.mxu0 0.0
      %451 = vmatprep.subr.mxu0 0.0
      %452 = vmatpush1.msra.mxu0 0.0
      %453 = vmatprep.subr.mxu0 0.0
      %454 = vmatpush1.msra.mxu0 0.0
      %455 = vmatprep.subr.mxu0 0.0
      %456 = vmatpush1.msra.mxu0 0.0
      %457 = vmatprep.subr.mxu0 0.0
      %458 = vmatpush1.msra.mxu0 0.0
      %459 = vmatprep.subr.mxu0 0.0
      %460 = vmatpush1.msra.mxu0 0.0
      %461 = vmatprep.subr.mxu0 0.0
      %462 = vmatpush1.msra.mxu0 0.0
      %463 = vmatprep.subr.mxu0 0.0
      %464 = vmatpush1.msra.mxu0 0.0
      %465 = vmatprep.subr.mxu0 0.0
      %466 = vmatpush1.msra.mxu0 0.0
      %467 = vmatprep.subr.mxu0 0.0
      %468 = vmatpush1.msra.mxu0 0.0
      %469 = vmatprep.subr.mxu0 0.0
      %470 = vmatpush1.msra.mxu0 0.0
      %471 = vmatprep.subr.mxu0 0.0
      %472 = vmatpush1.msra.mxu0 0.0
      %473 = vmatprep.subr.mxu0 0.0
      %474 = vmatpush1.msra.mxu0 0.0
      %475 = vmatprep.subr.mxu0 0.0
      %476 = vmatpush1.msra.mxu0 0.0
      %477 = vmatprep.subr.mxu0 0.0
      %478 = vmatpush1.msra.mxu0 0.0
      %479 = vmatprep.subr.mxu0 0.0
      %480 = vmatpush1.msra.mxu0 0.0
      %481 = vmatprep.subr.mxu0 0.0
      %482 = vmatpush1.msra.mxu0 0.0
      %483 = vmatprep.subr.mxu0 0.0
      %484 = vmatpush1.msra.mxu0 0.0
      %485 = vmatprep.subr.mxu0 0.0
      %486 = vmatpush1.msra.mxu0 0.0
      %487 = vmatprep.subr.mxu0 0.0
      %488 = vmatpush1.msra.mxu0 0.0
      %489 = vmatprep.subr.mxu0 0.0
      %490 = vmatpush1.msra.mxu0 0.0
      %491 = vmatprep.subr.mxu0 0.0
      %492 = vmatpush1.msra.mxu0 0.0
      %493 = vmatprep.subr.mxu0 0.0
      %494 = vmatpush1.msra.mxu0 0.0
      %495 = vmatprep.subr.mxu0 0.0
      %496 = vmatpush1.msra.mxu0 0.0
      %497 = vmatprep.subr.mxu0 0.0
      %498 = vmatpush1.msra.mxu0 0.0
      %499 = vmatprep.subr.mxu0 0.0
      %500 = vmatpush1.msra.mxu0 0.0
      %501 = vmatprep.subr.mxu0 0.0
      %502 = vmatpush1.msra.mxu0 0.0
      %503 = vmatprep.subr.mxu0 0.0
      %504 = vmatpush1.msra.mxu0 0.0
      %505 = vmatprep.subr.mxu0 0.0
      %506 = vmatpush1.msra.mxu0 0.0
      %507 = vmatprep.subr.mxu0 0.0
      %508 = vmatpush1.msra.mxu0 0.0
      %509 = vmatprep.subr.mxu0 0.0
      %510 = vmatpush1.msra.mxu0 0.0
      %511 = vmatprep.mubr.f32.mxu0 0.0
      %512 = vmatmul.mubr.f32.gmra.mrb[0].mxu0 %v442
      %v513 = vpop.f32.mrb[0].mxu0
      %v514 = vadd.f32 %v434, %v513
      %v515 = vpop.f32.mrb[0].mxu0
      %v516 = vadd.f32 %v434, %v515
      %517 = vmatprep.mubr.f32.mxu0 0.0
      %518 = vmatmul.mubr.f32.gmra.mrb[0].mxu0 %v445
      %v519 = vpop.f32.mrb[0].mxu0
      %v520 = vadd.f32 %v439, %v519
      %v521 = vpop.f32.mrb[0].mxu0
      %v522 = vadd.f32 %v439, %v521
      %523 = vdwg.mxu0
      %v524 = vmul.f32 %v514, 0.5
      %v525 = vmul.f32 %v516, 0.5
      %v526 = vmul.f32 %v520, 0.5
      %v527 = vmul.f32 %v522, 0.5
      %v528 = vmul.f32 %v514, 0.70710677
      %v529 = vmul.f32 %v516, 0.70710677
      %v530 = vmul.f32 %v520, 0.70710677
      %v531 = vmul.f32 %v522, 0.70710677
      %v532 = verf.f32.pop %v528
      %v533 = verf.f32.pop %v529
      %v534 = verf.f32.pop %v530
      %v535 = verf.f32.pop %v531
      %v536 = vadd.f32 %v532, 1.0
      %v537 = vadd.f32 %v533, 1.0
      %v538 = vadd.f32 %v534, 1.0
      %v539 = vadd.f32 %v535, 1.0
      %v540 = vmul.f32 %v524, %v536
      %v541 = vmul.f32 %v525, %v537
      %v542 = vmul.f32 %v526, %v538
      %v543 = vmul.f32 %v527, %v539
      %v544 = vld [vmem:[%s5] sm:$0xff]
      %v545 = vld [vmem:[%s5 + $0x8] sm:$0x3]
      %v546 = vld [vmem:[%s6] sm:$0xff]
      %v547 = vld [vmem:[%s6 + $0x8] sm:$0x3]
      %vm548 = vcmask 130048
      %v550 = vsel %vm548, %v546, 0
      %v553 = vsel %vm548, %v547, 0
      %555 = vmatprep.subr.mxu0 %v541
      %556 = vmatpush1.msra.mxu0 %v540
      %557 = vmatprep.subr.mxu0 %v543
      %558 = vmatpush1.msra.mxu0 %v542
      %559 = vmatprep.subr.mxu0 0.0
      %560 = vmatpush1.msra.mxu0 0.0
      %561 = vmatprep.subr.mxu0 0.0
      %562 = vmatpush1.msra.mxu0 0.0
      %563 = vmatprep.subr.mxu0 0.0
      %564 = vmatpush1.msra.mxu0 0.0
      %565 = vmatprep.subr.mxu0 0.0
      %566 = vmatpush1.msra.mxu0 0.0
      %567 = vmatprep.subr.mxu0 0.0
      %568 = vmatpush1.msra.mxu0 0.0
      %569 = vmatprep.subr.mxu0 0.0
      %570 = vmatpush1.msra.mxu0 0.0
      %571 = vmatprep.subr.mxu0 0.0
      %572 = vmatpush1.msra.mxu0 0.0
      %573 = vmatprep.subr.mxu0 0.0
      %574 = vmatpush1.msra.mxu0 0.0
      %575 = vmatprep.subr.mxu0 0.0
      %576 = vmatpush1.msra.mxu0 0.0
      %577 = vmatprep.subr.mxu0 0.0
      %578 = vmatpush1.msra.mxu0 0.0
      %579 = vmatprep.subr.mxu0 0.0
      %580 = vmatpush1.msra.mxu0 0.0
      %581 = vmatprep.subr.mxu0 0.0
      %582 = vmatpush1.msra.mxu0 0.0
      %583 = vmatprep.subr.mxu0 0.0
      %584 = vmatpush1.msra.mxu0 0.0
      %585 = vmatprep.subr.mxu0 0.0
      %586 = vmatpush1.msra.mxu0 0.0
      %587 = vmatprep.subr.mxu0 0.0
      %588 = vmatpush1.msra.mxu0 0.0
      %589 = vmatprep.subr.mxu0 0.0
      %590 = vmatpush1.msra.mxu0 0.0
      %591 = vmatprep.subr.mxu0 0.0
      %592 = vmatpush1.msra.mxu0 0.0
      %593 = vmatprep.subr.mxu0 0.0
      %594 = vmatpush1.msra.mxu0 0.0
      %595 = vmatprep.subr.mxu0 0.0
      %596 = vmatpush1.msra.mxu0 0.0
      %597 = vmatprep.subr.mxu0 0.0
      %598 = vmatpush1.msra.mxu0 0.0
      %599 = vmatprep.subr.mxu0 0.0
      %600 = vmatpush1.msra.mxu0 0.0
      %601 = vmatprep.subr.mxu0 0.0
      %602 = vmatpush1.msra.mxu0 0.0
      %603 = vmatprep.subr.mxu0 0.0
      %604 = vmatpush1.msra.mxu0 0.0
      %605 = vmatprep.subr.mxu0 0.0
      %606 = vmatpush1.msra.mxu0 0.0
      %607 = vmatprep.subr.mxu0 0.0
      %608 = vmatpush1.msra.mxu0 0.0
      %609 = vmatprep.subr.mxu0 0.0
      %610 = vmatpush1.msra.mxu0 0.0
      %611 = vmatprep.subr.mxu0 0.0
      %612 = vmatpush1.msra.mxu0 0.0
      %613 = vmatprep.subr.mxu0 0.0
      %614 = vmatpush1.msra.mxu0 0.0
      %615 = vmatprep.subr.mxu0 0.0
      %616 = vmatpush1.msra.mxu0 0.0
      %617 = vmatprep.subr.mxu0 0.0
      %618 = vmatpush1.msra.mxu0 0.0
      %619 = vmatprep.mubr.f32.mxu0 0.0
      %620 = vmatmul.mubr.f32.gmra.mrb[0].mxu0 %v550
      %v621 = vpop.f32.mrb[0].mxu0
      %v622 = vadd.f32 0.0, %v621
      %v623 = vpop.f32.mrb[0].mxu0
      %v624 = vadd.f32 0.0, %v623
      %625 = vmatprep.mubr.f32.mxu0 0.0
      %626 = vmatmul.mubr.f32.gmra.mrb[0].mxu0 %v553
      %v627 = vpop.f32.mrb[0].mxu0
      %v628 = vadd.f32 0.0, %v627
      %v629 = vpop.f32.mrb[0].mxu0
      %v630 = vadd.f32 0.0, %v629
      %631 = vdwg.mxu0
      %v633 = vsel %vm342, %v544, 0
      %v636 = vsel %vm342, %v545, 0
      %638 = vmatprep.subr.mxu0 %v426
      %639 = vmatpush1.msra.mxu0 %v425
      %640 = vmatprep.subr.mxu0 0.0
      %641 = vmatpush1.msra.mxu0 0.0
      %642 = vmatprep.subr.mxu0 0.0
      %643 = vmatpush1.msra.mxu0 0.0
      %644 = vmatprep.subr.mxu0 0.0
      %645 = vmatpush1.msra.mxu0 0.0
      %646 = vmatprep.subr.mxu0 0.0
      %647 = vmatpush1.msra.mxu0 0.0
      %648 = vmatprep.subr.mxu0 0.0
      %649 = vmatpush1.msra.mxu0 0.0
      %650 = vmatprep.subr.mxu0 0.0
      %651 = vmatpush1.msra.mxu0 0.0
      %652 = vmatprep.subr.mxu0 0.0
      %653 = vmatpush1.msra.mxu0 0.0
      %654 = vmatprep.subr.mxu0 0.0
      %655 = vmatpush1.msra.mxu0 0.0
      %656 = vmatprep.subr.mxu0 0.0
      %657 = vmatpush1.msra.mxu0 0.0
      %658 = vmatprep.subr.mxu0 0.0
      %659 = vmatpush1.msra.mxu0 0.0
      %660 = vmatprep.subr.mxu0 0.0
      %661 = vmatpush1.msra.mxu0 0.0
      %662 = vmatprep.subr.mxu0 0.0
      %663 = vmatpush1.msra.mxu0 0.0
      %664 = vmatprep.subr.mxu0 0.0
      %665 = vmatpush1.msra.mxu0 0.0
      %666 = vmatprep.subr.mxu0 0.0
      %667 = vmatpush1.msra.mxu0 0.0
      %668 = vmatprep.subr.mxu0 0.0
      %669 = vmatpush1.msra.mxu0 0.0
      %670 = vmatprep.subr.mxu0 0.0
      %671 = vmatpush1.msra.mxu0 0.0
      %672 = vmatprep.subr.mxu0 0.0
      %673 = vmatpush1.msra.mxu0 0.0
      %674 = vmatprep.subr.mxu0 0.0
      %675 = vmatpush1.msra.mxu0 0.0
      %676 = vmatprep.subr.mxu0 0.0
      %677 = vmatpush1.msra.mxu0 0.0
      %678 = vmatprep.subr.mxu0 0.0
      %679 = vmatpush1.msra.mxu0 0.0
      %680 = vmatprep.subr.mxu0 0.0
      %681 = vmatpush1.msra.mxu0 0.0
      %682 = vmatprep.subr.mxu0 0.0
      %683 = vmatpush1.msra.mxu0 0.0
      %684 = vmatprep.subr.mxu0 0.0
      %685 = vmatpush1.msra.mxu0 0.0
      %686 = vmatprep.subr.mxu0 0.0
      %687 = vmatpush1.msra.mxu0 0.0
      %688 = vmatprep.subr.mxu0 0.0
      %689 = vmatpush1.msra.mxu0 0.0
      %690 = vmatprep.subr.mxu0 0.0
      %691 = vmatpush1.msra.mxu0 0.0
      %692 = vmatprep.subr.mxu0 0.0
      %693 = vmatpush1.msra.mxu0 0.0
      %694 = vmatprep.subr.mxu0 0.0
      %695 = vmatpush1.msra.mxu0 0.0
      %696 = vmatprep.subr.mxu0 0.0
      %697 = vmatpush1.msra.mxu0 0.0
      %698 = vmatprep.subr.mxu0 0.0
      %699 = vmatpush1.msra.mxu0 0.0
      %700 = vmatprep.subr.mxu0 0.0
      %701 = vmatpush1.msra.mxu0 0.0
      %702 = vmatprep.mubr.f32.mxu0 0.0
      %703 = vmatmul.mubr.f32.gmra.mrb[0].mxu0 %v633
      %v704 = vpop.f32.mrb[0].mxu0
      %v705 = vadd.f32 %v622, %v704
      %v706 = vpop.f32.mrb[0].mxu0
      %v707 = vadd.f32 %v624, %v706
      %708 = vmatprep.mubr.f32.mxu0 0.0
      %709 = vmatmul.mubr.f32.gmra.mrb[0].mxu0 %v636
      %v710 = vpop.f32.mrb[0].mxu0
      %v711 = vadd.f32 %v628, %v710
      %v712 = vpop.f32.mrb[0].mxu0
      %v713 = vadd.f32 %v630, %v712
      %714 = vdwg.mxu0
      %v715 = vld [vmem:[%s7] sm:$0xff]
      %v716 = vld [vmem:[%s7 + $0x8] sm:$0x3]
      %v718 = vsel %vm342, %v715, 0
      %v721 = vsel %vm342, %v716, 0
      %723 = vmatprep.subr.mxu0 %v334
      %724 = vmatpush1.msra.mxu0 %v333
      %725 = vmatprep.subr.mxu0 0.0
      %726 = vmatpush1.msra.mxu0 0.0
      %727 = vmatprep.subr.mxu0 0.0
      %728 = vmatpush1.msra.mxu0 0.0
      %729 = vmatprep.subr.mxu0 0.0
      %730 = vmatpush1.msra.mxu0 0.0
      %731 = vmatprep.subr.mxu0 0.0
      %732 = vmatpush1.msra.mxu0 0.0
      %733 = vmatprep.subr.mxu0 0.0
      %734 = vmatpush1.msra.mxu0 0.0
      %735 = vmatprep.subr.mxu0 0.0
      %736 = vmatpush1.msra.mxu0 0.0
      %737 = vmatprep.subr.mxu0 0.0
      %738 = vmatpush1.msra.mxu0 0.0
      %739 = vmatprep.subr.mxu0 0.0
      %740 = vmatpush1.msra.mxu0 0.0
      %741 = vmatprep.subr.mxu0 0.0
      %742 = vmatpush1.msra.mxu0 0.0
      %743 = vmatprep.subr.mxu0 0.0
      %744 = vmatpush1.msra.mxu0 0.0
      %745 = vmatprep.subr.mxu0 0.0
      %746 = vmatpush1.msra.mxu0 0.0
      %747 = vmatprep.subr.mxu0 0.0
      %748 = vmatpush1.msra.mxu0 0.0
      %749 = vmatprep.subr.mxu0 0.0
      %750 = vmatpush1.msra.mxu0 0.0
      %751 = vmatprep.subr.mxu0 0.0
      %752 = vmatpush1.msra.mxu0 0.0
      %753 = vmatprep.subr.mxu0 0.0
      %754 = vmatpush1.msra.mxu0 0.0
      %755 = vmatprep.subr.mxu0 0.0
      %756 = vmatpush1.msra.mxu0 0.0
      %757 = vmatprep.subr.mxu0 0.0
      %758 = vmatpush1.msra.mxu0 0.0
      %759 = vmatprep.subr.mxu0 0.0
      %760 = vmatpush1.msra.mxu0 0.0
      %761 = vmatprep.subr.mxu0 0.0
      %762 = vmatpush1.msra.mxu0 0.0
      %763 = vmatprep.subr.mxu0 0.0
      %764 = vmatpush1.msra.mxu0 0.0
      %765 = vmatprep.subr.mxu0 0.0
      %766 = vmatpush1.msra.mxu0 0.0
      %767 = vmatprep.subr.mxu0 0.0
      %768 = vmatpush1.msra.mxu0 0.0
      %769 = vmatprep.subr.mxu0 0.0
      %770 = vmatpush1.msra.mxu0 0.0
      %771 = vmatprep.subr.mxu0 0.0
      %772 = vmatpush1.msra.mxu0 0.0
      %773 = vmatprep.subr.mxu0 0.0
      %774 = vmatpush1.msra.mxu0 0.0
      %775 = vmatprep.subr.mxu0 0.0
      %776 = vmatpush1.msra.mxu0 0.0
      %777 = vmatprep.subr.mxu0 0.0
      %778 = vmatpush1.msra.mxu0 0.0
      %779 = vmatprep.subr.mxu0 0.0
      %780 = vmatpush1.msra.mxu0 0.0
      %781 = vmatprep.subr.mxu0 0.0
      %782 = vmatpush1.msra.mxu0 0.0
      %783 = vmatprep.subr.mxu0 0.0
      %784 = vmatpush1.msra.mxu0 0.0
      %785 = vmatprep.subr.mxu0 0.0
      %786 = vmatpush1.msra.mxu0 0.0
      %787 = vmatprep.mubr.f32.mxu0 0.0
      %788 = vmatmul.mubr.f32.gmra.mrb[0].mxu0 %v718
      %v789 = vpop.f32.mrb[0].mxu0
      %v790 = vadd.f32 0.0, %v789
      %v791 = vpop.f32.mrb[0].mxu0
      %v792 = vadd.f32 0.0, %v791
      %793 = vmatprep.mubr.f32.mxu0 0.0
      %794 = vmatmul.mubr.f32.gmra.mrb[0].mxu0 %v721
      %v795 = vpop.f32.mrb[0].mxu0
      %v796 = vadd.f32 0.0, %v795
      %v797 = vpop.f32.mrb[0].mxu0
      %v798 = vadd.f32 0.0, %v797
      %799 = vdwg.mxu0
      %v800 = vadd.f32 %v705, %v790
      %v801 = vadd.f32 %v707, %v792
      %v802 = vadd.f32 %v711, %v796
      %v803 = vadd.f32 %v713, %v798
      %v804 = vld [vmem:[%s8] sm:$0xff]
      %v805 = vld [vmem:[%s8 + $0x8] sm:$0x3]
      %807 = vset.pattern.permute.xlu0 0
      %808 = vperm.xlu0 %807, %v804
      %v809 = vpop.permute.xlu0 %808
      %812 = vset.pattern.permute.xlu0 0
      %813 = vperm.xlu0 %812, %v805
      %v814 = vpop.permute.xlu0 %813
      %v816 = vadd.f32 %v800, %v809
      %v817 = vadd.f32 %v801, %v809
      %v818 = vadd.f32 %v802, %v814
      %v819 = vadd.f32 %v803, %v814
      %820 = vst [vmem:[%s332] sm:$0xff] %v816
      %821 = vst [vmem:[%s332 + $0x8] sm:$0xff] %v817
      %822 = vst [vmem:[%s332 + $0x10] sm:$0x3] %v818
      %823 = vst [vmem:[%s332 + $0x18] sm:$0x3] %v819
      %p824 = scmp.lt.s32.totalorder %s20, 1
      %s825 = scalar_select %p824, %s20, 1
      %s826 = smul.addr %s825, 4
      %s827 = smul.addr %s826, 8
      %s828 = scalar_lea.vmem %s9, %s827
      // Predicated region
      $region57: #{net_forward.1} parent=55 // pred_check
        %p829 = pneg %p232
      $region58: #{net_forward.1} parent=55 // pred_check_branch
        %831 = sbr.rel (%p829) target = $region60
      $region59: #{net_forward.1} parent=55 // pred_region
        _
      $region60: #{net_forward.1} parent=55 // pred_fallthru
        _
    $region56: #{net_forward.1} parent=5 // pred_fallthru
      _
    %p832 = scmp.le.s32.totalorder 2, %s15
    // Predicated region
    $region61: #{net_forward.1} parent=5 // pred_check
      %p833 = pneg %p832
    $region62: #{net_forward.1} parent=5 // pred_check_branch
      %835 = sbr.rel (%p833) target = $region64
    $region63: #{net_forward.1} parent=5 // pred_region
      %s836 = ssub.s32 %s15, 2
      // Predicated region
      $region65: #{net_forward.1} parent=63 // pred_check
        %p837 = pneg %p238
      $region66: #{net_forward.1} parent=63 // pred_check_branch
        %839 = sbr.rel (%p837) target = $region68
      $region67: #{net_forward.1} parent=63 // pred_region
        %p840 = scmp.lt.s32.totalorder %s21, 1
        %s841 = scalar_select %p840, %s21, 1
        %s842 = smul.addr %s841, 4
        %s843 = smul.addr %s842, 8
        %s844 = scalar_lea.vmem %s9, %s843
      $region68: #{net_forward.1} parent=63 // pred_fallthru
        _
    $region64: #{net_forward.1} parent=5 // pred_fallthru
      _
  $region6: #{net_forward.1} parent=0 // loop_footer
    %s19 = sadd.s32 1, %s15
  $region7: #{net_forward.1} parent=0 // loop_footer_branch
    %14 = sbr.rel target = $region3
  $region8: #{net_forward.1} parent=0 // loop_exit
    _

</llo_original>
